<compile_context>
chip_gen: v7x
topology: tpu7x:2x2x1
jax: 0.10.0
libtpu: 0.0.40
codegen_flags: <defaults>
</compile_context>

<pallas_src>
import functools
import math

import jax
import jax.numpy as jnp
from jax import lax
from jax.experimental import pallas as pl
from jax.experimental.pallas import tpu as pltpu

LOG_STD_LO = -10.0
LOG_STD_HI = 2.0


def gaussian_policy_kernel(x_ref, w1_ref, b1_ref, w2_ref, b2_ref,
                           wh_ref, bh_ref, out_ref, *, action_dim):
    # x tile arrives f32 straight from HBM; cast to bf16 in-kernel (saves the
    # wrapper-side cast + re-read pass over x in HBM).
    x = x_ref[...].astype(jnp.bfloat16)

    # fc1 + relu (bf16 MXU matmul with f32 accumulation; bias/relu in f32 on
    # the VPU — important for v5e, which has no bf16 VPU path).
    h = jnp.dot(x, w1_ref[...], preferred_element_type=jnp.float32) + b1_ref[...]
    h = jnp.maximum(h, 0.0)

    # fc2 + relu
    h = jnp.dot(h.astype(jnp.bfloat16), w2_ref[...],
                preferred_element_type=jnp.float32) + b2_ref[...]
    h = jnp.maximum(h, 0.0)

    # Fused heads: columns [0:A) = mean, [A:2A) = log_std, [2A:128) = pad.
    heads = jnp.dot(h.astype(jnp.bfloat16), wh_ref[...],
                    preferred_element_type=jnp.float32) + bh_ref[...]

    # std = exp(LO + tanh(.)*(HI-LO)/2) over all lanes (EUP); one per-lane
    # select keeps the mean lanes and replaces the rest with std.  Pad lanes
    # are left as std-of-garbage — the wrapper never reads them.
    log_std = LOG_STD_LO + jnp.tanh(heads) * (LOG_STD_HI - LOG_STD_LO) / 2.0
    std = jnp.exp(log_std)
    is_mean = lax.broadcasted_iota(jnp.int32, heads.shape, 1) < action_dim
    out_ref[...] = jnp.where(is_mean, heads, std).astype(out_ref.dtype)


def gaussian_policy_forward(x, params, action_dim, *, block_m=2048):
    """Returns (mean, std) of the Normal policy distribution.

    params = (w1, b1, w2, b2, wh, bh): bf16 weights in (in, out) layout, f32
    biases (1, out); wh/bh are the fused + 128-lane-padded mean|log_std heads.
    `block_m` should be a multiple of 8 (sublane).
    """
    w1, b1, w2, b2, wh, bh = params
    B, S = x.shape
    H = w1.shape[1]
    N_pad = wh.shape[1]  # fused head width, multiple of 128

    # Batch tiling:
    #  * small batch  -> one resident block (no per-step overhead at all);
    #  * large batch  -> tiles of <= block_m rows, always >= 2 grid steps so
    #    v7x's two TensorCores both get work under "parallel" semantics.
    #    The ragged tail (B % tm != 0) is handled by Pallas block clamping;
    #    out-of-range rows are never written back.
    if B <= block_m:
        tm = B
    else:
        half = 8 * pl.cdiv(pl.cdiv(B, 2), 8)   # ~B/2 rounded up to sublane mult
        tm = min(block_m, half)
    grid_m = pl.cdiv(B, tm)

    vmem = pltpu.MemorySpace.VMEM

    def resident(shape):
        # Full-array block, same block index every grid step -> stays in VMEM.
        return pl.BlockSpec(shape, lambda i: tuple(0 for _ in shape),
                            memory_space=vmem)

    # Double-buffered x/out tiles + resident weights.  Raise the scoped-VMEM
    # limit as needed (v5e defaults to 16 MiB; cap at v7x's 64 MiB physical).
    weight_bytes = sum(int(a.size) * a.dtype.itemsize
                       for a in (w1, b1, w2, b2, wh, bh))
    tile_bytes = 2 * (tm * S * 4 + tm * N_pad * 2)
    vmem_limit = int(min(max(2 * (weight_bytes + tile_bytes), 32 << 20), 64 << 20))

    cost = pl.CostEstimate(
        flops=2 * B * (S * H + H * H + H * N_pad),
        transcendentals=2 * B * N_pad,                       # tanh + exp
        bytes_accessed=B * S * 4 + weight_bytes + B * N_pad * 2,
    )

    out = pl.pallas_call(
        functools.partial(gaussian_policy_kernel, action_dim=action_dim),
        out_shape=jax.ShapeDtypeStruct((B, N_pad), jnp.bfloat16),
        grid=(grid_m,),
        in_specs=[
            pl.BlockSpec((tm, S), lambda i: (i, 0), memory_space=vmem),
            resident(w1.shape), resident(b1.shape),
            resident(w2.shape), resident(b2.shape),
            resident(wh.shape), resident(bh.shape),
        ],
        out_specs=pl.BlockSpec((tm, N_pad), lambda i: (i, 0), memory_space=vmem),
        compiler_params=pltpu.CompilerParams(
            dimension_semantics=("parallel",),
            vmem_limit_bytes=vmem_limit),
        cost_estimate=cost,
    )(x, w1, b1, w2, b2, wh, bh)

    mean = out[:, :action_dim].astype(jnp.float32)
    std = out[:, action_dim:2 * action_dim].astype(jnp.float32)
    return mean, std


def xavier_uniform(key, fan_in, fan_out, gain=1.0):
    # Matches torch.nn.init.xavier_uniform_ (gain=1); stored (in, out) so the
    # kernel computes y = x @ W + b directly on the MXU.
    a = gain * math.sqrt(6.0 / (fan_in + fan_out))
    return jax.random.uniform(key, (fan_in, fan_out), jnp.float32, -a, a)


def init_params(key, state_dim, action_dim, hidden_dim=256):
    k1, k2, k3, k4 = jax.random.split(key, 4)
    w1 = xavier_uniform(k1, state_dim, hidden_dim)
    w2 = xavier_uniform(k2, hidden_dim, hidden_dim)
    wm = xavier_uniform(k3, hidden_dim, action_dim)
    ws = xavier_uniform(k4, hidden_dim, action_dim)
    b1 = jnp.full((1, hidden_dim), 0.01, jnp.float32)
    b2 = jnp.full((1, hidden_dim), 0.01, jnp.float32)
    bm = jnp.full((1, action_dim), 0.01, jnp.float32)
    bs = jnp.full((1, action_dim), 0.01, jnp.float32)

    # Fuse the two heads and pad the output columns to a lane-dense 128 multiple.
    n_pad = 128 * pl.cdiv(2 * action_dim, 128)
    wh = jnp.zeros((hidden_dim, n_pad), jnp.float32)
    wh = wh.at[:, :action_dim].set(wm).at[:, action_dim:2 * action_dim].set(ws)
    bh = jnp.zeros((1, n_pad), jnp.float32)
    bh = bh.at[:, :action_dim].set(bm).at[:, action_dim:2 * action_dim].set(bs)

    bf16 = lambda w: w.astype(jnp.bfloat16)
    return (bf16(w1), b1, bf16(w2), b2, bf16(wh), bh)


if __name__ == "__main__":
    key = jax.random.PRNGKey(0)
    k_x, k_p = jax.random.split(key)

    batch, state_dim, action_dim, hidden_dim = 16, 24, 6, 256
    x = jax.random.normal(k_x, (batch, state_dim), jnp.float32)
    params = init_params(k_p, state_dim, action_dim, hidden_dim)

    # block_m=8 so even this small batch exercises the 2-step "parallel" grid.
    mean, std = gaussian_policy_forward(x, params, action_dim, block_m=8)
    jax.block_until_ready((mean, std))

    # Pure-JAX reference using the same bf16-weight / f32-accumulate arithmetic.
    w1, b1, w2, b2, wh, bh = params
    f32 = lambda a: a.astype(jnp.float32)
    xq = f32(x.astype(jnp.bfloat16))
    h = jnp.maximum(xq @ f32(w1) + b1, 0.0)
    h = jnp.maximum(f32(h.astype(jnp.bfloat16)) @ f32(w2) + b2, 0.0)
    heads = f32(h.astype(jnp.bfloat16)) @ f32(wh) + bh
    mean_ref = heads[:, :action_dim]
    log_std_ref = jnp.tanh(heads[:, action_dim:2 * action_dim])
    log_std_ref = LOG_STD_LO + log_std_ref * (LOG_STD_HI - LOG_STD_LO) / 2
    std_ref = jnp.exp(log_std_ref)

    assert mean.shape == (batch, action_dim) and std.shape == (batch, action_dim)
    # Kernel output stream is bf16 (halves the padded HBM write), so allow one
    # bf16 ulp of rounding on top of the shared bf16-weight arithmetic.
    assert jnp.allclose(mean, mean_ref, atol=2e-3, rtol=8e-3)
    assert jnp.allclose(std, std_ref, atol=1e-4, rtol=8e-3)

    # TODO(synk): torch.distributions.Normal has no Pallas equivalent; the kernel
    # returns the distribution parameters (mean, std) instead.
    print("KERNEL_OK")
</pallas_src>

<mosaic_0001>
module attributes {stable_mosaic.version = 11 : i64} {
  func.func @gaussian_policy_kernel(%arg0: i32, %arg1: memref<8x24xf32, #tpu.memory_space<vmem>>, %arg2: memref<24x256xbf16, #tpu.memory_space<vmem>>, %arg3: memref<1x256xf32, #tpu.memory_space<vmem>>, %arg4: memref<256x256xbf16, #tpu.memory_space<vmem>>, %arg5: memref<1x256xf32, #tpu.memory_space<vmem>>, %arg6: memref<256x128xbf16, #tpu.memory_space<vmem>>, %arg7: memref<1x128xf32, #tpu.memory_space<vmem>>, %arg8: memref<8x128xbf16, #tpu.memory_space<vmem>>) attributes {dimension_semantics = [#tpu.dimension_semantics<parallel>], iteration_bounds = array<i64: 2>, scalar_prefetch = 0 : i64, scratch_operands = 0 : i64, tpu.core_type = #tpu.core_type<tc>, window_params = [{transform_indices = @transform_0, window_bounds = array<i64: 8, 24>}, {pipeline_mode = #tpu.pipeline_mode<synchronous>, transform_indices = @transform_1, window_bounds = array<i64: 24, 256>}, {pipeline_mode = #tpu.pipeline_mode<synchronous>, transform_indices = @transform_2, window_bounds = array<i64: 1, 256>}, {pipeline_mode = #tpu.pipeline_mode<synchronous>, transform_indices = @transform_3, window_bounds = array<i64: 256, 256>}, {pipeline_mode = #tpu.pipeline_mode<synchronous>, transform_indices = @transform_4, window_bounds = array<i64: 1, 256>}, {pipeline_mode = #tpu.pipeline_mode<synchronous>, transform_indices = @transform_5, window_bounds = array<i64: 256, 128>}, {pipeline_mode = #tpu.pipeline_mode<synchronous>, transform_indices = @transform_6, window_bounds = array<i64: 1, 128>}, {transform_indices = @transform_7, window_bounds = array<i64: 8, 128>}]} {
    %c0 = arith.constant 0 : index
    %c0_0 = arith.constant 0 : index
    %0 = vector.load %arg1[%c0, %c0_0] : memref<8x24xf32, #tpu.memory_space<vmem>>, vector<8x24xf32>
    %1 = arith.truncf %0 : vector<8x24xf32> to vector<8x24xbf16>
    %c0_1 = arith.constant 0 : index
    %c0_2 = arith.constant 0 : index
    %2 = vector.load %arg2[%c0_1, %c0_2] : memref<24x256xbf16, #tpu.memory_space<vmem>>, vector<24x256xbf16>
    %cst = arith.constant dense<0.000000e+00> : vector<8x256xf32>
    %3 = tpu.matmul %1, %2, %cst {dimension_numbers = #tpu.dot_dimension_numbers<[1], [0], [0], [1], [0, 0, 1, 1], [], []>} : vector<8x24xbf16>, vector<24x256xbf16>, vector<8x256xf32> -> vector<8x256xf32>
    %c0_3 = arith.constant 0 : index
    %c0_4 = arith.constant 0 : index
    %4 = vector.load %arg3[%c0_3, %c0_4] : memref<1x256xf32, #tpu.memory_space<vmem>>, vector<1x256xf32>
    %5 = vector.broadcast %4 : vector<1x256xf32> to vector<8x256xf32>
    %6 = arith.addf %3, %5 : vector<8x256xf32>
    %cst_5 = arith.constant 0.000000e+00 : f32
    %7 = vector.broadcast %cst_5 : f32 to vector<8x256xf32>
    %8 = arith.maximumf %6, %7 : vector<8x256xf32>
    %9 = arith.truncf %8 : vector<8x256xf32> to vector<8x256xbf16>
    %c0_6 = arith.constant 0 : index
    %c0_7 = arith.constant 0 : index
    %10 = vector.load %arg4[%c0_6, %c0_7] : memref<256x256xbf16, #tpu.memory_space<vmem>>, vector<256x256xbf16>
    %cst_8 = arith.constant dense<0.000000e+00> : vector<8x256xf32>
    %11 = tpu.matmul %9, %10, %cst_8 {dimension_numbers = #tpu.dot_dimension_numbers<[1], [0], [0], [1], [0, 0, 1, 1], [], []>} : vector<8x256xbf16>, vector<256x256xbf16>, vector<8x256xf32> -> vector<8x256xf32>
    %c0_9 = arith.constant 0 : index
    %c0_10 = arith.constant 0 : index
    %12 = vector.load %arg5[%c0_9, %c0_10] : memref<1x256xf32, #tpu.memory_space<vmem>>, vector<1x256xf32>
    %13 = vector.broadcast %12 : vector<1x256xf32> to vector<8x256xf32>
    %14 = arith.addf %11, %13 : vector<8x256xf32>
    %cst_11 = arith.constant 0.000000e+00 : f32
    %15 = vector.broadcast %cst_11 : f32 to vector<8x256xf32>
    %16 = arith.maximumf %14, %15 : vector<8x256xf32>
    %17 = arith.truncf %16 : vector<8x256xf32> to vector<8x256xbf16>
    %c0_12 = arith.constant 0 : index
    %c0_13 = arith.constant 0 : index
    %18 = vector.load %arg6[%c0_12, %c0_13] : memref<256x128xbf16, #tpu.memory_space<vmem>>, vector<256x128xbf16>
    %cst_14 = arith.constant dense<0.000000e+00> : vector<8x128xf32>
    %19 = tpu.matmul %17, %18, %cst_14 {dimension_numbers = #tpu.dot_dimension_numbers<[1], [0], [0], [1], [0, 0, 1, 1], [], []>} : vector<8x256xbf16>, vector<256x128xbf16>, vector<8x128xf32> -> vector<8x128xf32>
    %c0_15 = arith.constant 0 : index
    %c0_16 = arith.constant 0 : index
    %20 = vector.load %arg7[%c0_15, %c0_16] : memref<1x128xf32, #tpu.memory_space<vmem>>, vector<1x128xf32>
    %21 = vector.broadcast %20 : vector<1x128xf32> to vector<8x128xf32>
    %22 = arith.addf %19, %21 : vector<8x128xf32>
    %23 = math.tanh %22 : vector<8x128xf32>
    %cst_17 = arith.constant 1.200000e+01 : f32
    %24 = vector.broadcast %cst_17 : f32 to vector<8x128xf32>
    %25 = arith.mulf %23, %24 : vector<8x128xf32>
    %cst_18 = arith.constant 2.000000e+00 : f32
    %26 = vector.broadcast %cst_18 : f32 to vector<8x128xf32>
    %27 = arith.divf %25, %26 : vector<8x128xf32>
    %cst_19 = arith.constant -1.000000e+01 : f32
    %28 = vector.broadcast %cst_19 : f32 to vector<8x128xf32>
    %29 = arith.addf %28, %27 : vector<8x128xf32>
    %30 = math.exp %29 : vector<8x128xf32>
    %31 = tpu.iota {dimensions = array<i32: 1>} : vector<8x128xi32>
    %c6_i32 = arith.constant 6 : i32
    %32 = vector.broadcast %c6_i32 : i32 to vector<8x128xi32>
    %33 = arith.cmpi slt, %31, %32 : vector<8x128xi32>
    %34 = arith.select %33, %22, %30 : vector<8x128xi1>, vector<8x128xf32>
    %35 = arith.truncf %34 : vector<8x128xf32> to vector<8x128xbf16>
    %c0_20 = arith.constant 0 : index
    %c0_21 = arith.constant 0 : index
    %36 = vector.load %arg8[%c0_20, %c0_21] : memref<8x128xbf16, #tpu.memory_space<vmem>>, vector<8x128xbf16>
    tpu.vector_store %arg8[%c0_20, %c0_21], %35 {strides = array<i32>} : memref<8x128xbf16, #tpu.memory_space<vmem>>, vector<8x128xbf16>,
    return
  }
  func.func @transform_0(%arg0: i32) -> (i32, i32) {
    %c0_i32 = arith.constant 0 : i32
    %c0_i32_0 = arith.constant 0 : i32
    return %arg0, %c0_i32 : i32, i32
  }
  func.func @transform_1(%arg0: i32) -> (i32, i32) {
    %c0_i32 = arith.constant 0 : i32
    %c0_i32_0 = arith.constant 0 : i32
    %c0_i32_1 = arith.constant 0 : i32
    return %c0_i32, %c0_i32_0 : i32, i32
  }
  func.func @transform_2(%arg0: i32) -> (i32, i32) {
    %c0_i32 = arith.constant 0 : i32
    %c0_i32_0 = arith.constant 0 : i32
    %c0_i32_1 = arith.constant 0 : i32
    return %c0_i32, %c0_i32_0 : i32, i32
  }
  func.func @transform_3(%arg0: i32) -> (i32, i32) {
    %c0_i32 = arith.constant 0 : i32
    %c0_i32_0 = arith.constant 0 : i32
    %c0_i32_1 = arith.constant 0 : i32
    return %c0_i32, %c0_i32_0 : i32, i32
  }
  func.func @transform_4(%arg0: i32) -> (i32, i32) {
    %c0_i32 = arith.constant 0 : i32
    %c0_i32_0 = arith.constant 0 : i32
    %c0_i32_1 = arith.constant 0 : i32
    return %c0_i32, %c0_i32_0 : i32, i32
  }
  func.func @transform_5(%arg0: i32) -> (i32, i32) {
    %c0_i32 = arith.constant 0 : i32
    %c0_i32_0 = arith.constant 0 : i32
    %c0_i32_1 = arith.constant 0 : i32
    return %c0_i32, %c0_i32_0 : i32, i32
  }
  func.func @transform_6(%arg0: i32) -> (i32, i32) {
    %c0_i32 = arith.constant 0 : i32
    %c0_i32_0 = arith.constant 0 : i32
    %c0_i32_1 = arith.constant 0 : i32
    return %c0_i32, %c0_i32_0 : i32, i32
  }
  func.func @transform_7(%arg0: i32) -> (i32, i32) {
    %c0_i32 = arith.constant 0 : i32
    %c0_i32_0 = arith.constant 0 : i32
    return %arg0, %c0_i32 : i32, i32
  }
}

</mosaic_0001>

<llo_original>
// kernel: tpu_custom_call.1
$region0: #{tpu_custom_call.1}
  #allocation0 [shape = 'u32[]', space=smem, size = 0x4, offset = 0x4, fixed_abs, tag = 'smem constant byte address 0x4 - core index']
  #allocation1 [shape = 'u32[144,128]{1,0:T(1,128)}', space=vmem, size = 0x12000, scoped, tag = 'internal scratch']
  %s0 = inlined_call_operand.hbm [shape: f32[16,24], index: 0, kind: input, shape index: {}]
  %s1 = inlined_call_operand.hbm [shape: bf16[24,256], index: 1, kind: input, shape index: {}]
  %s2 = inlined_call_operand.vmem [shape: f32[1,256], index: 2, kind: input, shape index: {}]
  %s3 = inlined_call_operand.hbm [shape: bf16[256,256], index: 3, kind: input, shape index: {}]
  %s4 = inlined_call_operand.vmem [shape: f32[1,256], index: 4, kind: input, shape index: {}]
  %s5 = inlined_call_operand.hbm [shape: bf16[256,128], index: 5, kind: input, shape index: {}]
  %s6 = inlined_call_operand.vmem [shape: f32[1,128], index: 6, kind: input, shape index: {}]
  %s7 = inlined_call_operand.hbm [shape: bf16[16,128], index: 7, kind: output, shape index: {}]
  %s8 = sld [smem:[#allocation0]]
  $region77: #{tpu_custom_call.1} parent=0
    _
  %s10 = ssub.s32 1, %s8
  %s11 = scalar_select 0, %s10, %s8
  $region1: #{tpu_custom_call.1} parent=0
    #allocation2 [shape = 'u8[8192]{0}', space=vmem, size = 0x2000, scoped, tag = 'input window, operand 0']
    #allocation3 [shape = 's32[2]{0}', space=sflag, size = 0x8, scoped, tag = 'scoped memory for tpu_custom_call.1']
    #allocation4 [shape = 's32[2]{0}', space=sflag, size = 0x8, scoped, tag = 'scoped memory for tpu_custom_call.1']
    #allocation5 [shape = 'u8[12288]{0}', space=vmem, size = 0x3000, scoped, tag = 'input window, operand 1, single buffered']
    #allocation6 [shape = 's32[1]{0}', space=sflag, size = 0x4, scoped, tag = 'scoped memory for tpu_custom_call.1']
    #allocation7 [shape = 'u8[131072]{0}', space=vmem, size = 0x20000, scoped, tag = 'input window, operand 3, single buffered']
    #allocation8 [shape = 'u8[65536]{0}', space=vmem, size = 0x10000, scoped, tag = 'input window, operand 5, single buffered']
    #allocation9 [shape = 's32[1]{0}', space=sflag, size = 0x4, scoped, tag = 'scoped memory for tpu_custom_call.1']
    #allocation10 [shape = 'u8[4096]{0}', space=vmem, size = 0x1000, scoped, tag = 'output window, operand 0']
    %12 = vsyncpa [#allocation3], 0
    %s13 = scalar_lea.sflag [#allocation3], 1
    %14 = vsyncpa %s13, 0
    %15 = vsyncpa [#allocation6], 0
    %16 = vsyncpa [#allocation9], 0
    %17 = vsyncpa [#allocation4], 0
    %s18 = scalar_lea.sflag [#allocation4], 1
    %19 = vsyncpa %s18, 0
    loop: start=0, step=1, limit=4
    $region2: #{tpu_custom_call.1} parent=1 // loop_pre_header
      _
    $region3: #{tpu_custom_call.1} parent=1 // loop_header
      %s21 = sphi 0, %s25
      %p22 = scmp.ge.s32.totalorder %s21, 4
      %s31 = sphi 0, %s33
      %s34 = sphi 0, %s31
      %s35 = sphi 0, %s34
      %s51 = sphi 0, %s35
      %s55 = sphi 0, %s55
      %s57 = sphi 0, %s55
      %s58 = sphi 0, %s57
      %s72 = sphi 0, %s58
      %s76 = sphi 0, %s76
      %s78 = sphi 0, %s76
      %s79 = sphi 0, %s78
      %s93 = sphi 0, %s79
      %s97 = sphi 0, %s97
      %s99 = sphi 0, %s97
      %s100 = sphi 0, %s99
      %s114 = sphi 0, %s100
      %s118 = sphi 0, %s118
      %s120 = sphi 0, %s118
      %s121 = sphi 0, %s120
      %s135 = sphi 0, %s121
      %s139 = sphi 0, %s139
      %s141 = sphi 0, %s139
      %s142 = sphi 0, %s141
      %s156 = sphi 0, %s142
      %s160 = sphi 0, %s160
      %s162 = sphi 0, %s160
      %s163 = sphi 0, %s162
      %s177 = sphi 0, %s163
      %s183 = sphi 0, %s185
      %s186 = sphi 0, %s183
      %s187 = sphi 0, %s186
      %s203 = sphi 0, %s187
    $region4: #{tpu_custom_call.1} parent=1 // loop_header_branch
      %24 = sbr.rel (%p22) target = $region8
    $region5: #{tpu_custom_call.1} parent=1 // loop_body
      %s26 = ssub.s32 %s21, 1
      %s27 = ssub.s32 %s21, 2
      %s28 = sadd.s32 %s21, 1
      %s29 = ssub.s32 %s21, %s28
      %p30 = scmp.eq.s32.totalorder %s29, 0
      %s32 = sadd.s32 %s31, 1
      %s33 = scalar_select %p30, %s31, %s32
      %p36 = pneg %p30
      %p37 = scmp.eq.s32.totalorder %s21, 1
      %p38 = por %p36, %p37
      %p39 = scmp.ne.s32.totalorder %s31, %s34
      %p40 = scmp.eq.s32.totalorder %s21, 0
      %p41 = por %p39, %p40
      %p42 = scmp.ne.s32.totalorder %s31, %s34
      %p43 = scmp.eq.s32.totalorder %s26, 1
      %p44 = por %p42, %p43
      %p45 = scmp.ne.s32.totalorder %s34, %s35
      %p46 = scmp.eq.s32.totalorder %s26, 0
      %p47 = por %p45, %p46
      %p48 = scmp.ne.s32.totalorder %s34, %s35
      %p49 = scmp.eq.s32.totalorder %s27, 1
      %p50 = por %p48, %p49
      %p52 = scmp.ne.s32.totalorder %s35, %s51
      %p53 = scmp.eq.s32.totalorder %s27, 0
      %p54 = por %p52, %p53
      %s56 = sadd.s32 %s55, 1
      %p59 = scmp.eq.s32.totalorder %s21, 1
      %p60 = scmp.ne.s32.totalorder %s55, %s57
      %p61 = scmp.eq.s32.totalorder %s21, 0
      %p62 = por %p60, %p61
      %p63 = scmp.ne.s32.totalorder %s55, %s57
      %p64 = scmp.eq.s32.totalorder %s26, 1
      %p65 = por %p63, %p64
      %p66 = scmp.ne.s32.totalorder %s57, %s58
      %p67 = scmp.eq.s32.totalorder %s26, 0
      %p68 = por %p66, %p67
      %p69 = scmp.ne.s32.totalorder %s57, %s58
      %p70 = scmp.eq.s32.totalorder %s27, 1
      %p71 = por %p69, %p70
      %p73 = scmp.ne.s32.totalorder %s58, %s72
      %p74 = scmp.eq.s32.totalorder %s27, 0
      %p75 = por %p73, %p74
      %s77 = sadd.s32 %s76, 1
      %p80 = scmp.eq.s32.totalorder %s21, 1
      %p81 = scmp.ne.s32.totalorder %s76, %s78
      %p82 = scmp.eq.s32.totalorder %s21, 0
      %p83 = por %p81, %p82
      %p84 = scmp.ne.s32.totalorder %s76, %s78
      %p85 = scmp.eq.s32.totalorder %s26, 1
      %p86 = por %p84, %p85
      %p87 = scmp.ne.s32.totalorder %s78, %s79
      %p88 = scmp.eq.s32.totalorder %s26, 0
      %p89 = por %p87, %p88
      %p90 = scmp.ne.s32.totalorder %s78, %s79
      %p91 = scmp.eq.s32.totalorder %s27, 1
      %p92 = por %p90, %p91
      %p94 = scmp.ne.s32.totalorder %s79, %s93
      %p95 = scmp.eq.s32.totalorder %s27, 0
      %p96 = por %p94, %p95
      %s98 = sadd.s32 %s97, 1
      %p101 = scmp.eq.s32.totalorder %s21, 1
      %p102 = scmp.ne.s32.totalorder %s97, %s99
      %p103 = scmp.eq.s32.totalorder %s21, 0
      %p104 = por %p102, %p103
      %p105 = scmp.ne.s32.totalorder %s97, %s99
      %p106 = scmp.eq.s32.totalorder %s26, 1
      %p107 = por %p105, %p106
      %p108 = scmp.ne.s32.totalorder %s99, %s100
      %p109 = scmp.eq.s32.totalorder %s26, 0
      %p110 = por %p108, %p109
      %p111 = scmp.ne.s32.totalorder %s99, %s100
      %p112 = scmp.eq.s32.totalorder %s27, 1
      %p113 = por %p111, %p112
      %p115 = scmp.ne.s32.totalorder %s100, %s114
      %p116 = scmp.eq.s32.totalorder %s27, 0
      %p117 = por %p115, %p116
      %s119 = sadd.s32 %s118, 1
      %p122 = scmp.eq.s32.totalorder %s21, 1
      %p123 = scmp.ne.s32.totalorder %s118, %s120
      %p124 = scmp.eq.s32.totalorder %s21, 0
      %p125 = por %p123, %p124
      %p126 = scmp.ne.s32.totalorder %s118, %s120
      %p127 = scmp.eq.s32.totalorder %s26, 1
      %p128 = por %p126, %p127
      %p129 = scmp.ne.s32.totalorder %s120, %s121
      %p130 = scmp.eq.s32.totalorder %s26, 0
      %p131 = por %p129, %p130
      %p132 = scmp.ne.s32.totalorder %s120, %s121
      %p133 = scmp.eq.s32.totalorder %s27, 1
      %p134 = por %p132, %p133
      %p136 = scmp.ne.s32.totalorder %s121, %s135
      %p137 = scmp.eq.s32.totalorder %s27, 0
      %p138 = por %p136, %p137
      %s140 = sadd.s32 %s139, 1
      %p143 = scmp.eq.s32.totalorder %s21, 1
      %p144 = scmp.ne.s32.totalorder %s139, %s141
      %p145 = scmp.eq.s32.totalorder %s21, 0
      %p146 = por %p144, %p145
      %p147 = scmp.ne.s32.totalorder %s139, %s141
      %p148 = scmp.eq.s32.totalorder %s26, 1
      %p149 = por %p147, %p148
      %p150 = scmp.ne.s32.totalorder %s141, %s142
      %p151 = scmp.eq.s32.totalorder %s26, 0
      %p152 = por %p150, %p151
      %p153 = scmp.ne.s32.totalorder %s141, %s142
      %p154 = scmp.eq.s32.totalorder %s27, 1
      %p155 = por %p153, %p154
      %p157 = scmp.ne.s32.totalorder %s142, %s156
      %p158 = scmp.eq.s32.totalorder %s27, 0
      %p159 = por %p157, %p158
      %s161 = sadd.s32 %s160, 1
      %p164 = scmp.eq.s32.totalorder %s21, 1
      %p165 = scmp.ne.s32.totalorder %s160, %s162
      %p166 = scmp.eq.s32.totalorder %s21, 0
      %p167 = por %p165, %p166
      %p168 = scmp.ne.s32.totalorder %s160, %s162
      %p169 = scmp.eq.s32.totalorder %s26, 1
      %p170 = por %p168, %p169
      %p171 = scmp.ne.s32.totalorder %s162, %s163
      %p172 = scmp.eq.s32.totalorder %s26, 0
      %p173 = por %p171, %p172
      %p174 = scmp.ne.s32.totalorder %s162, %s163
      %p175 = scmp.eq.s32.totalorder %s27, 1
      %p176 = por %p174, %p175
      %p178 = scmp.ne.s32.totalorder %s163, %s177
      %p179 = scmp.eq.s32.totalorder %s27, 0
      %p180 = por %p178, %p179
      %s181 = ssub.s32 %s21, %s28
      %p182 = scmp.eq.s32.totalorder %s181, 0
      %s184 = sadd.s32 %s183, 1
      %s185 = scalar_select %p182, %s183, %s184
      %p188 = pneg %p182
      %p189 = scmp.eq.s32.totalorder %s21, 1
      %p190 = por %p188, %p189
      %p191 = scmp.ne.s32.totalorder %s183, %s186
      %p192 = scmp.eq.s32.totalorder %s21, 0
      %p193 = por %p191, %p192
      %p194 = scmp.ne.s32.totalorder %s183, %s186
      %p195 = scmp.eq.s32.totalorder %s26, 1
      %p196 = por %p194, %p195
      %p197 = scmp.ne.s32.totalorder %s186, %s187
      %p198 = scmp.eq.s32.totalorder %s26, 0
      %p199 = por %p197, %p198
      %p200 = scmp.ne.s32.totalorder %s186, %s187
      %p201 = scmp.eq.s32.totalorder %s27, 1
      %p202 = por %p200, %p201
      %p204 = scmp.ne.s32.totalorder %s187, %s203
      %p205 = scmp.eq.s32.totalorder %s27, 0
      %p206 = por %p204, %p205
      %p207 = scmp.le.s32.totalorder 1, %s21
      %p208 = scmp.lt.s32.totalorder %s21, 3
      %p209 = pnand %p207, %p208
      %p210 = pneg %p209
      // Predicated region
      $region9: #{tpu_custom_call.1} parent=5 // pred_check
        _
      $region10: #{tpu_custom_call.1} parent=5 // pred_check_branch
        %212 = sbr.rel (%p209) target = $region12
      $region11: #{tpu_custom_call.1} parent=5 // pred_region
        %s213 = ssub.s32 %s21, 1
        // Predicated region
        $region13: #{tpu_custom_call.1} parent=11 // pred_check
          %p214 = pneg %p68
        $region14: #{tpu_custom_call.1} parent=11 // pred_check_branch
          %216 = sbr.rel (%p214) target = $region16
        $region15: #{tpu_custom_call.1} parent=11 // pred_region
          %s218 = ssub.s32 384, 384
          %219 = vsyncadd [#allocation6], %s218
          %s220 = sshll.u32 [#allocation5], 4
          %s221 = int_to_ptr.vmem [resolvable:$true] %s220
          %226 = dma.hbm_to_vmem [thread:$0]  %s1, 384, %s221, [#allocation6], 128, 128, 8
        $region16: #{tpu_custom_call.1} parent=11 // pred_fallthru
          _
        // Predicated region
        $region17: #{tpu_custom_call.1} parent=11 // pred_check
          %p227 = pneg %p89
        $region18: #{tpu_custom_call.1} parent=11 // pred_check_branch
          %229 = sbr.rel (%p227) target = $region20
        $region19: #{tpu_custom_call.1} parent=11 // pred_region
          _
        $region20: #{tpu_custom_call.1} parent=11 // pred_fallthru
          _
        // Predicated region
        $region21: #{tpu_custom_call.1} parent=11 // pred_check
          %p230 = pneg %p110
        $region22: #{tpu_custom_call.1} parent=11 // pred_check_branch
          %232 = sbr.rel (%p230) target = $region24
        $region23: #{tpu_custom_call.1} parent=11 // pred_region
          %s234 = ssub.s32 4096, 4096
          %235 = vsyncadd [#allocation6], %s234
          %s236 = sshll.u32 [#allocation7], 4
          %s237 = int_to_ptr.vmem [resolvable:$true] %s236
          %242 = dma.hbm_to_vmem [thread:$0]  %s3, 4096, %s237, [#allocation6], 128, 128, 8
        $region24: #{tpu_custom_call.1} parent=11 // pred_fallthru
          _
        // Predicated region
        $region25: #{tpu_custom_call.1} parent=11 // pred_check
          %p243 = pneg %p131
        $region26: #{tpu_custom_call.1} parent=11 // pred_check_branch
          %245 = sbr.rel (%p243) target = $region28
        $region27: #{tpu_custom_call.1} parent=11 // pred_region
          _
        $region28: #{tpu_custom_call.1} parent=11 // pred_fallthru
          _
        // Predicated region
        $region29: #{tpu_custom_call.1} parent=11 // pred_check
          %p246 = pneg %p152
        $region30: #{tpu_custom_call.1} parent=11 // pred_check_branch
          %248 = sbr.rel (%p246) target = $region32
        $region31: #{tpu_custom_call.1} parent=11 // pred_region
          %s250 = ssub.s32 2048, 2048
          %251 = vsyncadd [#allocation9], %s250
          %s252 = sshll.u32 [#allocation8], 4
          %s253 = int_to_ptr.vmem [resolvable:$true] %s252
          %258 = dma.hbm_to_vmem [thread:$0]  %s5, 2048, %s253, [#allocation9], 64, 64, 4
        $region32: #{tpu_custom_call.1} parent=11 // pred_fallthru
          _
        // Predicated region
        $region33: #{tpu_custom_call.1} parent=11 // pred_check
          %p259 = pneg %p173
        $region34: #{tpu_custom_call.1} parent=11 // pred_check_branch
          %261 = sbr.rel (%p259) target = $region36
        $region35: #{tpu_custom_call.1} parent=11 // pred_region
          _
        $region36: #{tpu_custom_call.1} parent=11 // pred_fallthru
          _
      $region12: #{tpu_custom_call.1} parent=5 // pred_fallthru
        _
      %p262 = scmp.lt.s32.totalorder %s21, 2
      // Predicated region
      $region37: #{tpu_custom_call.1} parent=5 // pred_check
        %p263 = pneg %p262
      $region38: #{tpu_custom_call.1} parent=5 // pred_check_branch
        %265 = sbr.rel (%p263) target = $region40
      $region39: #{tpu_custom_call.1} parent=5 // pred_region
        // Predicated region
        $region41: #{tpu_custom_call.1} parent=39 // pred_check
          %p266 = pneg %p41
        $region42: #{tpu_custom_call.1} parent=39 // pred_check_branch
          %268 = sbr.rel (%p266) target = $region44
        $region43: #{tpu_custom_call.1} parent=39 // pred_region
          %s269 = sand.u32 %s31, 1
          %s270 = scalar_lea.sflag [#allocation3], %s269
          %s271 = sand.u32 %s31, 1
          %s272 = smul.addr %s271, 8
          %s273 = scalar_lea.vmem [#allocation2], %s272
          %s275 = ssub.s32 128, 128
          %276 = vsyncadd %s270, %s275
          %s277 = smul.addr %s21, 128
          %s278 = scalar_lea.hbm %s0, %s277
          %s280 = sshll.u32 %s273, 4
          %s281 = int_to_ptr.vmem [resolvable:$true] %s280
          %283 = dma.hbm_to_vmem [thread:$0]  %s278, 128, %s281, %s270
        $region44: #{tpu_custom_call.1} parent=39 // pred_fallthru
          _
      $region40: #{tpu_custom_call.1} parent=5 // pred_fallthru
        _
      %p284 = scmp.le.s32.totalorder 1, %s21
      %p285 = scmp.lt.s32.totalorder %s21, 3
      %p286 = pnand %p284, %p285
      %p287 = pneg %p286
      // Predicated region
      $region45: #{tpu_custom_call.1} parent=5 // pred_check
        _
      $region46: #{tpu_custom_call.1} parent=5 // pred_check_branch
        %289 = sbr.rel (%p286) target = $region48
      $region47: #{tpu_custom_call.1} parent=5 // pred_region
        %s290 = ssub.s32 %s21, 1
        %s291 = sand.u32 %s34, 1
        %s292 = scalar_lea.sflag [#allocation3], %s291
        %s293 = sand.u32 %s34, 1
        %s294 = smul.addr %s293, 8
        %s295 = scalar_lea.vmem [#allocation2], %s294
        // Predicated region
        $region49: #{tpu_custom_call.1} parent=47 // pred_check
          %p296 = pneg %p47
        $region50: #{tpu_custom_call.1} parent=47 // pred_check_branch
          %298 = sbr.rel (%p296) target = $region52
        $region51: #{tpu_custom_call.1} parent=47 // pred_region
          %299 = dma.done %s292, 128
        $region52: #{tpu_custom_call.1} parent=47 // pred_fallthru
          _
        // Predicated region
        $region53: #{tpu_custom_call.1} parent=47 // pred_check
          %p300 = pneg %p68
        $region54: #{tpu_custom_call.1} parent=47 // pred_check_branch
          %302 = sbr.rel (%p300) target = $region56
        $region55: #{tpu_custom_call.1} parent=47 // pred_region
          %303 = dma.done [#allocation6], 384
        $region56: #{tpu_custom_call.1} parent=47 // pred_fallthru
          _
        // Predicated region
        $region57: #{tpu_custom_call.1} parent=47 // pred_check
          %p304 = pneg %p110
        $region58: #{tpu_custom_call.1} parent=47 // pred_check_branch
          %306 = sbr.rel (%p304) target = $region60
        $region59: #{tpu_custom_call.1} parent=47 // pred_region
          %307 = dma.done [#allocation6], 4096
        $region60: #{tpu_custom_call.1} parent=47 // pred_fallthru
          _
        // Predicated region
        $region61: #{tpu_custom_call.1} parent=47 // pred_check
          %p308 = pneg %p152
        $region62: #{tpu_custom_call.1} parent=47 // pred_check_branch
          %310 = sbr.rel (%p308) target = $region64
        $region63: #{tpu_custom_call.1} parent=47 // pred_region
          %311 = dma.done [#allocation9], 2048
        $region64: #{tpu_custom_call.1} parent=47 // pred_fallthru
          _
        %s312 = sand.u32 %s34, 1
        %s313 = scalar_lea.sflag [#allocation3], %s312
        %s314 = sand.u32 %s34, 1
        %s315 = smul.addr %s314, 8
        %s316 = scalar_lea.vmem [#allocation2], %s315
        %p317 = pneg %p47
        %p318 = pneg %p44
        %p319 = pneg %p68
        %p320 = pneg %p65
        %p321 = pneg %p89
        %p322 = pneg %p86
        %p323 = pneg %p110
        %p324 = pneg %p107
        %p325 = pneg %p131
        %p326 = pneg %p128
        %p327 = pneg %p152
        %p328 = pneg %p149
        %p329 = pneg %p173
        %p330 = pneg %p170
        %p331 = pneg %p199
        %p332 = pneg %p196
        %s333 = sand.u32 %s186, 1
        %s334 = scalar_lea.sflag [#allocation4], %s333
        %s335 = sand.u32 %s186, 1
        %s336 = smul.addr %s335, 4
        %s337 = scalar_lea.vmem [#allocation10], %s336
        %v339 = vld [vmem:[%s295] sm:$0xff]
        %v340 = vpack.c.bf16 %v339, %v339
        %v341 = vld [vmem:[#allocation5] sm:$0xff]
        %v342 = vld [vmem:[#allocation5 + $0x8] sm:$0xff]
        %v343 = vld [vmem:[#allocation5 + $0x10] sm:$0xff]
        %v344 = vld [vmem:[%s2] sm:$0x3]
        %v346 = vlaneseq
        %v347 = vshrl.u32 %v346, 7
        %v348 = vsub.s32 0, %v347
        %v349 = vrot.slane %v344, %v348
        %v350 = vlaneseq
        %v351 = vshrl.u32 %v350, 7
        %v352 = vsub.s32 1, %v351
        %v353 = vrot.slane %v344, %v352
        %v359 = vunpack.c.l.b16 %v341
        %v360 = vunpack.c.h.b16 %v341
        %v361 = vunpack.c.l.b16 %v342
        %v362 = vunpack.c.h.b16 %v342
        %v363 = vunpack.c.l.b16 %v343
        %v364 = vunpack.c.h.b16 %v343
        %v365 = vpack.c.b16 %v361, %v359
        %v366 = vpack.c.b16 %v362, %v360
        %v367 = vpack.c.b16 %v363, %v363
        %v368 = vpack.c.b16 %v364, %v364
        %vm371 = vcmask 195584
        %v373 = vsel %vm371, %v340, 0
        %vm375 = vcmask 1043456
        %v377 = vsel %vm375, %v367, 0
        %v380 = vsel %vm375, %v368, 0
        %382 = vmatprep.subr.bf16.mxu0 %v366
        %383 = vmatpush1.bf16.msra.mxu0 %v365
        %384 = vmatprep.subr.bf16.mxu0 %v380
        %385 = vmatpush1.bf16.msra.mxu0 %v377
        %386 = vmatprep.subr.bf16.mxu0 0
        %387 = vmatpush1.bf16.msra.mxu0 0
        %388 = vmatprep.subr.bf16.mxu0 0
        %389 = vmatpush1.bf16.msra.mxu0 0
        %390 = vmatprep.subr.bf16.mxu0 0
        %391 = vmatpush1.bf16.msra.mxu0 0
        %392 = vmatprep.subr.bf16.mxu0 0
        %393 = vmatpush1.bf16.msra.mxu0 0
        %394 = vmatprep.subr.bf16.mxu0 0
        %395 = vmatpush1.bf16.msra.mxu0 0
        %396 = vmatprep.subr.bf16.mxu0 0
        %397 = vmatpush1.bf16.msra.mxu0 0
        %398 = vmatprep.subr.bf16.mxu0 0
        %399 = vmatpush1.bf16.msra.mxu0 0
        %400 = vmatprep.subr.bf16.mxu0 0
        %401 = vmatpush1.bf16.msra.mxu0 0
        %402 = vmatprep.subr.bf16.mxu0 0
        %403 = vmatpush1.bf16.msra.mxu0 0
        %404 = vmatprep.subr.bf16.mxu0 0
        %405 = vmatpush1.bf16.msra.mxu0 0
        %406 = vmatprep.subr.bf16.mxu0 0
        %407 = vmatpush1.bf16.msra.mxu0 0
        %408 = vmatprep.subr.bf16.mxu0 0
        %409 = vmatpush1.bf16.msra.mxu0 0
        %410 = vmatprep.subr.bf16.mxu0 0
        %411 = vmatpush1.bf16.msra.mxu0 0
        %412 = vmatprep.subr.bf16.mxu0 0
        %413 = vmatpush1.bf16.msra.mxu0 0
        %414 = vmatprep.mubr.bf16.mxu0 0
        %415 = vmatmul.mubr.bf16.gmra.mrb[0].mxu0 %v373
        %v416 = vpop.f32.mrb[0].mxu0
        %v417 = vadd.f32 %v349, %v416
        %v418 = vpop.f32.mrb[0].mxu0
        %v419 = vadd.f32 %v353, %v418
        %v420 = vpop.f32.mrb[0].mxu0
        %v421 = vpop.f32.mrb[0].mxu0
        %422 = vdwg.mxu0
        %v423 = vmax.f32 %v417, 0.0
        %v424 = vmax.f32 %v419, 0.0
        %v425 = vpack.c.bf16 %v423, %v423
        %v426 = vpack.c.bf16 %v424, %v424
        %v427 = vld [vmem:[#allocation7] sm:$0xff]
        %v428 = vld [vmem:[#allocation7 + $0x8] sm:$0xff]
        %v429 = vld [vmem:[#allocation7 + $0x10] sm:$0xff]
        %v430 = vld [vmem:[#allocation7 + $0x18] sm:$0xff]
        %v431 = vld [vmem:[#allocation7 + $0x20] sm:$0xff]
        %v432 = vld [vmem:[#allocation7 + $0x28] sm:$0xff]
        %v433 = vld [vmem:[#allocation7 + $0x30] sm:$0xff]
        %v434 = vld [vmem:[#allocation7 + $0x38] sm:$0xff]
        %v435 = vld [vmem:[#allocation7 + $0x40] sm:$0xff]
        %v436 = vld [vmem:[#allocation7 + $0x48] sm:$0xff]
        %v437 = vld [vmem:[#allocation7 + $0x50] sm:$0xff]
        %v438 = vld [vmem:[#allocation7 + $0x58] sm:$0xff]
        %v439 = vld [vmem:[#allocation7 + $0x60] sm:$0xff]
        %v440 = vld [vmem:[#allocation7 + $0x68] sm:$0xff]
        %v441 = vld [vmem:[#allocation7 + $0x70] sm:$0xff]
        %v442 = vld [vmem:[#allocation7 + $0x78] sm:$0xff]
        %v443 = vld [vmem:[#allocation7 + $0x80] sm:$0xff]
        %v444 = vld [vmem:[#allocation7 + $0x88] sm:$0xff]
        %v445 = vld [vmem:[#allocation7 + $0x90] sm:$0xff]
        %v446 = vld [vmem:[#allocation7 + $0x98] sm:$0xff]
        %v447 = vld [vmem:[#allocation7 + $0xa0] sm:$0xff]
        %v448 = vld [vmem:[#allocation7 + $0xa8] sm:$0xff]
        %v449 = vld [vmem:[#allocation7 + $0xb0] sm:$0xff]
        %v450 = vld [vmem:[#allocation7 + $0xb8] sm:$0xff]
        %v451 = vld [vmem:[#allocation7 + $0xc0] sm:$0xff]
        %v452 = vld [vmem:[#allocation7 + $0xc8] sm:$0xff]
        %v453 = vld [vmem:[#allocation7 + $0xd0] sm:$0xff]
        %v454 = vld [vmem:[#allocation7 + $0xd8] sm:$0xff]
        %v455 = vld [vmem:[#allocation7 + $0xe0] sm:$0xff]
        %v456 = vld [vmem:[#allocation7 + $0xe8] sm:$0xff]
        %v457 = vld [vmem:[#allocation7 + $0xf0] sm:$0xff]
        %v458 = vld [vmem:[#allocation7 + $0xf8] sm:$0xff]
        %v459 = vld [vmem:[%s4] sm:$0x3]
        %v461 = vlaneseq
        %v462 = vshrl.u32 %v461, 7
        %v463 = vsub.s32 0, %v462
        %v464 = vrot.slane %v459, %v463
        %v465 = vlaneseq
        %v466 = vshrl.u32 %v465, 7
        %v467 = vsub.s32 1, %v466
        %v468 = vrot.slane %v459, %v467
        %v503 = vunpack.c.l.b16 %v427
        %v504 = vunpack.c.h.b16 %v427
        %v505 = vunpack.c.l.b16 %v428
        %v506 = vunpack.c.h.b16 %v428
        %v507 = vunpack.c.l.b16 %v429
        %v508 = vunpack.c.h.b16 %v429
        %v509 = vunpack.c.l.b16 %v430
        %v510 = vunpack.c.h.b16 %v430
        %v511 = vunpack.c.l.b16 %v431
        %v512 = vunpack.c.h.b16 %v431
        %v513 = vunpack.c.l.b16 %v432
        %v514 = vunpack.c.h.b16 %v432
        %v515 = vunpack.c.l.b16 %v433
        %v516 = vunpack.c.h.b16 %v433
        %v517 = vunpack.c.l.b16 %v434
        %v518 = vunpack.c.h.b16 %v434
        %v519 = vunpack.c.l.b16 %v435
        %v520 = vunpack.c.h.b16 %v435
        %v521 = vunpack.c.l.b16 %v436
        %v522 = vunpack.c.h.b16 %v436
        %v523 = vunpack.c.l.b16 %v437
        %v524 = vunpack.c.h.b16 %v437
        %v525 = vunpack.c.l.b16 %v438
        %v526 = vunpack.c.h.b16 %v438
        %v527 = vunpack.c.l.b16 %v439
        %v528 = vunpack.c.h.b16 %v439
        %v529 = vunpack.c.l.b16 %v440
        %v530 = vunpack.c.h.b16 %v440
        %v531 = vunpack.c.l.b16 %v441
        %v532 = vunpack.c.h.b16 %v441
        %v533 = vunpack.c.l.b16 %v442
        %v534 = vunpack.c.h.b16 %v442
        %v535 = vunpack.c.l.b16 %v443
        %v536 = vunpack.c.h.b16 %v443
        %v537 = vunpack.c.l.b16 %v444
        %v538 = vunpack.c.h.b16 %v444
        %v539 = vunpack.c.l.b16 %v445
        %v540 = vunpack.c.h.b16 %v445
        %v541 = vunpack.c.l.b16 %v446
        %v542 = vunpack.c.h.b16 %v446
        %v543 = vunpack.c.l.b16 %v447
        %v544 = vunpack.c.h.b16 %v447
        %v545 = vunpack.c.l.b16 %v448
        %v546 = vunpack.c.h.b16 %v448
        %v547 = vunpack.c.l.b16 %v449
        %v548 = vunpack.c.h.b16 %v449
        %v549 = vunpack.c.l.b16 %v450
        %v550 = vunpack.c.h.b16 %v450
        %v551 = vunpack.c.l.b16 %v451
        %v552 = vunpack.c.h.b16 %v451
        %v553 = vunpack.c.l.b16 %v452
        %v554 = vunpack.c.h.b16 %v452
        %v555 = vunpack.c.l.b16 %v453
        %v556 = vunpack.c.h.b16 %v453
        %v557 = vunpack.c.l.b16 %v454
        %v558 = vunpack.c.h.b16 %v454
        %v559 = vunpack.c.l.b16 %v455
        %v560 = vunpack.c.h.b16 %v455
        %v561 = vunpack.c.l.b16 %v456
        %v562 = vunpack.c.h.b16 %v456
        %v563 = vunpack.c.l.b16 %v457
        %v564 = vunpack.c.h.b16 %v457
        %v565 = vunpack.c.l.b16 %v458
        %v566 = vunpack.c.h.b16 %v458
        %v567 = vpack.c.b16 %v505, %v503
        %v568 = vpack.c.b16 %v506, %v504
        %v569 = vpack.c.b16 %v509, %v507
        %v570 = vpack.c.b16 %v510, %v508
        %v571 = vpack.c.b16 %v513, %v511
        %v572 = vpack.c.b16 %v514, %v512
        %v573 = vpack.c.b16 %v517, %v515
        %v574 = vpack.c.b16 %v518, %v516
        %v575 = vpack.c.b16 %v521, %v519
        %v576 = vpack.c.b16 %v522, %v520
        %v577 = vpack.c.b16 %v525, %v523
        %v578 = vpack.c.b16 %v526, %v524
        %v579 = vpack.c.b16 %v529, %v527
        %v580 = vpack.c.b16 %v530, %v528
        %v581 = vpack.c.b16 %v533, %v531
        %v582 = vpack.c.b16 %v534, %v532
        %v583 = vpack.c.b16 %v537, %v535
        %v584 = vpack.c.b16 %v538, %v536
        %v585 = vpack.c.b16 %v541, %v539
        %v586 = vpack.c.b16 %v542, %v540
        %v587 = vpack.c.b16 %v545, %v543
        %v588 = vpack.c.b16 %v546, %v544
        %v589 = vpack.c.b16 %v549, %v547
        %v590 = vpack.c.b16 %v550, %v548
        %v591 = vpack.c.b16 %v553, %v551
        %v592 = vpack.c.b16 %v554, %v552
        %v593 = vpack.c.b16 %v557, %v555
        %v594 = vpack.c.b16 %v558, %v556
        %v595 = vpack.c.b16 %v561, %v559
        %v596 = vpack.c.b16 %v562, %v560
        %v597 = vpack.c.b16 %v565, %v563
        %v598 = vpack.c.b16 %v566, %v564
        %631 = vmatprep.subr.bf16.mxu0 %v568
        %632 = vmatpush1.bf16.msra.mxu0 %v567
        %633 = vmatprep.subr.bf16.mxu0 %v570
        %634 = vmatpush1.bf16.msra.mxu0 %v569
        %635 = vmatprep.subr.bf16.mxu0 %v572
        %636 = vmatpush1.bf16.msra.mxu0 %v571
        %637 = vmatprep.subr.bf16.mxu0 %v574
        %638 = vmatpush1.bf16.msra.mxu0 %v573
        %639 = vmatprep.subr.bf16.mxu0 %v576
        %640 = vmatpush1.bf16.msra.mxu0 %v575
        %641 = vmatprep.subr.bf16.mxu0 %v578
        %642 = vmatpush1.bf16.msra.mxu0 %v577
        %643 = vmatprep.subr.bf16.mxu0 %v580
        %644 = vmatpush1.bf16.msra.mxu0 %v579
        %645 = vmatprep.subr.bf16.mxu0 %v582
        %646 = vmatpush1.bf16.msra.mxu0 %v581
        %647 = vmatprep.subr.bf16.mxu0 %v584
        %648 = vmatpush1.bf16.msra.mxu0 %v583
        %649 = vmatprep.subr.bf16.mxu0 %v586
        %650 = vmatpush1.bf16.msra.mxu0 %v585
        %651 = vmatprep.subr.bf16.mxu0 %v588
        %652 = vmatpush1.bf16.msra.mxu0 %v587
        %653 = vmatprep.subr.bf16.mxu0 %v590
        %654 = vmatpush1.bf16.msra.mxu0 %v589
        %655 = vmatprep.subr.bf16.mxu0 %v592
        %656 = vmatpush1.bf16.msra.mxu0 %v591
        %657 = vmatprep.subr.bf16.mxu0 %v594
        %658 = vmatpush1.bf16.msra.mxu0 %v593
        %659 = vmatprep.subr.bf16.mxu0 %v596
        %660 = vmatpush1.bf16.msra.mxu0 %v595
        %661 = vmatprep.subr.bf16.mxu0 %v598
        %662 = vmatpush1.bf16.msra.mxu0 %v597
        %663 = vmatprep.mubr.bf16.mxu0 %v426
        %664 = vmatmul.mubr.bf16.gmra.mrb[0].mxu0 %v425
        %v665 = vpop.f32.mrb[0].mxu0
        %v666 = vadd.f32 %v464, %v665
        %v667 = vpop.f32.mrb[0].mxu0
        %v668 = vadd.f32 %v468, %v667
        %v669 = vpop.f32.mrb[0].mxu0
        %v670 = vpop.f32.mrb[0].mxu0
        %671 = vdwg.mxu0
        %v672 = vmax.f32 %v666, 0.0
        %v673 = vmax.f32 %v668, 0.0
        %v674 = vpack.c.bf16 %v672, %v672
        %v675 = vpack.c.bf16 %v673, %v673
        %v676 = vld [vmem:[#allocation8] sm:$0xf]
        %v677 = vld [vmem:[#allocation8 + $0x4] sm:$0xf]
        %v678 = vld [vmem:[#allocation8 + $0x8] sm:$0xf]
        %v679 = vld [vmem:[#allocation8 + $0xc] sm:$0xf]
        %v680 = vld [vmem:[#allocation8 + $0x10] sm:$0xf]
        %v681 = vld [vmem:[#allocation8 + $0x14] sm:$0xf]
        %v682 = vld [vmem:[#allocation8 + $0x18] sm:$0xf]
        %v683 = vld [vmem:[#allocation8 + $0x1c] sm:$0xf]
        %v684 = vld [vmem:[#allocation8 + $0x20] sm:$0xf]
        %v685 = vld [vmem:[#allocation8 + $0x24] sm:$0xf]
        %v686 = vld [vmem:[#allocation8 + $0x28] sm:$0xf]
        %v687 = vld [vmem:[#allocation8 + $0x2c] sm:$0xf]
        %v688 = vld [vmem:[#allocation8 + $0x30] sm:$0xf]
        %v689 = vld [vmem:[#allocation8 + $0x34] sm:$0xf]
        %v690 = vld [vmem:[#allocation8 + $0x38] sm:$0xf]
        %v691 = vld [vmem:[#allocation8 + $0x3c] sm:$0xf]
        %v692 = vld [vmem:[#allocation8 + $0x40] sm:$0xf]
        %v693 = vld [vmem:[#allocation8 + $0x44] sm:$0xf]
        %v694 = vld [vmem:[#allocation8 + $0x48] sm:$0xf]
        %v695 = vld [vmem:[#allocation8 + $0x4c] sm:$0xf]
        %v696 = vld [vmem:[#allocation8 + $0x50] sm:$0xf]
        %v697 = vld [vmem:[#allocation8 + $0x54] sm:$0xf]
        %v698 = vld [vmem:[#allocation8 + $0x58] sm:$0xf]
        %v699 = vld [vmem:[#allocation8 + $0x5c] sm:$0xf]
        %v700 = vld [vmem:[#allocation8 + $0x60] sm:$0xf]
        %v701 = vld [vmem:[#allocation8 + $0x64] sm:$0xf]
        %v702 = vld [vmem:[#allocation8 + $0x68] sm:$0xf]
        %v703 = vld [vmem:[#allocation8 + $0x6c] sm:$0xf]
        %v704 = vld [vmem:[#allocation8 + $0x70] sm:$0xf]
        %v705 = vld [vmem:[#allocation8 + $0x74] sm:$0xf]
        %v706 = vld [vmem:[#allocation8 + $0x78] sm:$0xf]
        %v707 = vld [vmem:[#allocation8 + $0x7c] sm:$0xf]
        %v708 = vld [vmem:[%s6] sm:$0x1]
        %v710 = vlaneseq
        %v711 = vshrl.u32 %v710, 7
        %v712 = vsub.s32 0, %v711
        %v713 = vrot.slane %v708, %v712
        %v747 = vunpack.c.l.b16 %v676
        %v748 = vunpack.c.l.b16 %v677
        %v749 = vunpack.c.l.b16 %v678
        %v750 = vunpack.c.l.b16 %v679
        %v751 = vunpack.c.l.b16 %v680
        %v752 = vunpack.c.l.b16 %v681
        %v753 = vunpack.c.l.b16 %v682
        %v754 = vunpack.c.l.b16 %v683
        %v755 = vunpack.c.l.b16 %v684
        %v756 = vunpack.c.l.b16 %v685
        %v757 = vunpack.c.l.b16 %v686
        %v758 = vunpack.c.l.b16 %v687
        %v759 = vunpack.c.l.b16 %v688
        %v760 = vunpack.c.l.b16 %v689
        %v761 = vunpack.c.l.b16 %v690
        %v762 = vunpack.c.l.b16 %v691
        %v763 = vunpack.c.l.b16 %v692
        %v764 = vunpack.c.l.b16 %v693
        %v765 = vunpack.c.l.b16 %v694
        %v766 = vunpack.c.l.b16 %v695
        %v767 = vunpack.c.l.b16 %v696
        %v768 = vunpack.c.l.b16 %v697
        %v769 = vunpack.c.l.b16 %v698
        %v770 = vunpack.c.l.b16 %v699
        %v771 = vunpack.c.l.b16 %v700
        %v772 = vunpack.c.l.b16 %v701
        %v773 = vunpack.c.l.b16 %v702
        %v774 = vunpack.c.l.b16 %v703
        %v775 = vunpack.c.l.b16 %v704
        %v776 = vunpack.c.l.b16 %v705
        %v777 = vunpack.c.l.b16 %v706
        %v778 = vunpack.c.l.b16 %v707
        %v779 = vpack.c.b16 %v748, %v747
        %v780 = vpack.c.b16 %v750, %v749
        %v781 = vpack.c.b16 %v752, %v751
        %v782 = vpack.c.b16 %v754, %v753
        %v783 = vpack.c.b16 %v756, %v755
        %v784 = vpack.c.b16 %v758, %v757
        %v785 = vpack.c.b16 %v760, %v759
        %v786 = vpack.c.b16 %v762, %v761
        %v787 = vpack.c.b16 %v764, %v763
        %v788 = vpack.c.b16 %v766, %v765
        %v789 = vpack.c.b16 %v768, %v767
        %v790 = vpack.c.b16 %v770, %v769
        %v791 = vpack.c.b16 %v772, %v771
        %v792 = vpack.c.b16 %v774, %v773
        %v793 = vpack.c.b16 %v776, %v775
        %v794 = vpack.c.b16 %v778, %v777
        %811 = vmatprep.subr.bf16.mxu0 0
        %812 = vmatpush1.bf16.msra.mxu0 %v779
        %813 = vmatprep.subr.bf16.mxu0 0
        %814 = vmatpush1.bf16.msra.mxu0 %v780
        %815 = vmatprep.subr.bf16.mxu0 0
        %816 = vmatpush1.bf16.msra.mxu0 %v781
        %817 = vmatprep.subr.bf16.mxu0 0
        %818 = vmatpush1.bf16.msra.mxu0 %v782
        %819 = vmatprep.subr.bf16.mxu0 0
        %820 = vmatpush1.bf16.msra.mxu0 %v783
        %821 = vmatprep.subr.bf16.mxu0 0
        %822 = vmatpush1.bf16.msra.mxu0 %v784
        %823 = vmatprep.subr.bf16.mxu0 0
        %824 = vmatpush1.bf16.msra.mxu0 %v785
        %825 = vmatprep.subr.bf16.mxu0 0
        %826 = vmatpush1.bf16.msra.mxu0 %v786
        %827 = vmatprep.subr.bf16.mxu0 0
        %828 = vmatpush1.bf16.msra.mxu0 %v787
        %829 = vmatprep.subr.bf16.mxu0 0
        %830 = vmatpush1.bf16.msra.mxu0 %v788
        %831 = vmatprep.subr.bf16.mxu0 0
        %832 = vmatpush1.bf16.msra.mxu0 %v789
        %833 = vmatprep.subr.bf16.mxu0 0
        %834 = vmatpush1.bf16.msra.mxu0 %v790
        %835 = vmatprep.subr.bf16.mxu0 0
        %836 = vmatpush1.bf16.msra.mxu0 %v791
        %837 = vmatprep.subr.bf16.mxu0 0
        %838 = vmatpush1.bf16.msra.mxu0 %v792
        %839 = vmatprep.subr.bf16.mxu0 0
        %840 = vmatpush1.bf16.msra.mxu0 %v793
        %841 = vmatprep.subr.bf16.mxu0 0
        %842 = vmatpush1.bf16.msra.mxu0 %v794
        %843 = vmatprep.mubr.bf16.mxu0 %v675
        %844 = vmatmul.mubr.bf16.gmra.mrb[0].mxu0 %v674
        %v845 = vpop.f32.mrb[0].mxu0
        %v846 = vadd.f32 %v713, %v845
        %v847 = vpop.f32.mrb[0].mxu0
        %v848 = vpop.f32.mrb[0].mxu0
        %v849 = vpop.f32.mrb[0].mxu0
        %850 = vdwg.mxu0
        %v851 = vtanh.pop %v846
        %v852 = vmul.f32 %v851, 12.0
        %v853 = vrcp.pop 2.0
        %v854 = vmul.f32 %v852, %v853
        %v855 = vadd.f32 %v854, -10.0
        %v856 = vmul.f32 %v855, 1.442695
        %v857 = vpow.pop %v856
        %v858 = vlaneseq
        %v859 = vand.u32 %v858, 127
        %vm860 = vcmp.lt.s32.totalorder %v859, 6
        %v861 = vsel %vm860, %v846, %v857
        %v862 = vpack.c.bf16 %v861, %v861
        %863 = vst [vmem:[%s337] sm:$0xf] %v862
        %s864 = sand.u32 %s186, 1
        %s865 = scalar_lea.sflag [#allocation4], %s864
        %s866 = sand.u32 %s186, 1
        %s867 = smul.addr %s866, 4
        %s868 = scalar_lea.vmem [#allocation10], %s867
        // Predicated region
        $region65: #{tpu_custom_call.1} parent=47 // pred_check
          %p869 = pneg %p196
        $region66: #{tpu_custom_call.1} parent=47 // pred_check_branch
          %871 = sbr.rel (%p869) target = $region68
        $region67: #{tpu_custom_call.1} parent=47 // pred_region
          %s873 = ssub.s32 64, 64
          %874 = vsyncadd %s865, %s873
          %s875 = smul.addr %s26, 64
          %s876 = scalar_lea.hbm %s7, %s875
          %s878 = sshll.u32 %s868, 4
          %s879 = int_to_ptr.vmem [resolvable:$true] %s878
          %881 = dma.vmem_to_hbm [thread:$0]  %s879, 64, %s876, %s865
        $region68: #{tpu_custom_call.1} parent=47 // pred_fallthru
          _
      $region48: #{tpu_custom_call.1} parent=5 // pred_fallthru
        _
      %p882 = scmp.le.s32.totalorder 2, %s21
      // Predicated region
      $region69: #{tpu_custom_call.1} parent=5 // pred_check
        %p883 = pneg %p882
      $region70: #{tpu_custom_call.1} parent=5 // pred_check_branch
        %885 = sbr.rel (%p883) target = $region72
      $region71: #{tpu_custom_call.1} parent=5 // pred_region
        %s886 = ssub.s32 %s21, 2
        // Predicated region
        $region73: #{tpu_custom_call.1} parent=71 // pred_check
          %p887 = pneg %p202
        $region74: #{tpu_custom_call.1} parent=71 // pred_check_branch
          %889 = sbr.rel (%p887) target = $region76
        $region75: #{tpu_custom_call.1} parent=71 // pred_region
          %s890 = sand.u32 %s187, 1
          %s891 = scalar_lea.sflag [#allocation4], %s890
          %s892 = sand.u32 %s187, 1
          %s893 = smul.addr %s892, 4
          %s894 = scalar_lea.vmem [#allocation10], %s893
          %895 = dma.done %s891, 64
        $region76: #{tpu_custom_call.1} parent=71 // pred_fallthru
          _
      $region72: #{tpu_custom_call.1} parent=5 // pred_fallthru
        _
    $region6: #{tpu_custom_call.1} parent=1 // loop_footer
      %s25 = sadd.s32 1, %s21
    $region7: #{tpu_custom_call.1} parent=1 // loop_footer_branch
      %20 = sbr.rel target = $region3
    $region8: #{tpu_custom_call.1} parent=1 // loop_exit
      _
    %896 = vsyncpa [#allocation3], 1
    %s897 = scalar_lea.sflag [#allocation3], 1
    %898 = vsyncpa %s897, 1
    %899 = vsyncpa [#allocation6], 1
    %900 = vsyncpa [#allocation9], 1
    %901 = vsyncpa [#allocation4], 1
    %s902 = scalar_lea.sflag [#allocation4], 1
    %903 = vsyncpa %s902, 1

</llo_original>
